<compile_context>
chip_gen: v5e
topology: v5e:2x2
jax: 0.10.0
libtpu: 0.0.40
codegen_flags: <defaults>
</compile_context>

<pallas_src>
import jax
import jax.numpy as jnp
from jax.experimental import pallas as pl
from jax.experimental.pallas import tpu as pltpu


F_PAD = 128        # pad F_out (32) -> full lane width: unmasked vst, full MXU lanes
TILE_M = 1024      # output-row tile
TILE_K = 2048      # contraction tile (multiple of TILE_M so both divide n_pad)


def _round_up(x, m):
    return (x + m - 1) // m * m


# ---------------------------------------------------------------------------
# Hot kernel: out = diag(d_i) @ (A @ msg_hat) + bias
#   A       : raw int8 edge counts, tiled (tm, tk), upconverted to bf16 in VMEM
#   msg_hat : (X @ W^T) * d_j, bf16, fully resident in VMEM (constant index_map)
#   output block is resident across the contraction axis k and is used directly
#   as the f32 accumulator (init under k==0, d_i * acc + bias under k==last).
# ---------------------------------------------------------------------------
def _gcn_agg_kernel(a_ref, m_ref, d_ref, b_ref, o_ref):
    k = pl.program_id(1)
    tk = a_ref.shape[1]

    @pl.when(k == 0)
    def _():
        o_ref[...] = jnp.zeros_like(o_ref)

    # int8 counts -> bf16 (exact for small counts), then bf16xbf16 -> f32 on MXU.
    a_bf16 = a_ref[...].astype(jnp.float32).astype(jnp.bfloat16)
    m_blk = m_ref[pl.ds(pl.multiple_of(k * tk, tk), tk), :]
    o_ref[...] += jnp.dot(a_bf16, m_blk, preferred_element_type=jnp.float32)

    @pl.when(k == pl.num_programs(1) - 1)
    def _():
        o_ref[...] = d_ref[...] * o_ref[...] + b_ref[...]


def gcn_conv_pallas(x, edge_index, weight, bias):
    """GCNConv(add_self_loops=False, normalize=True) forward via Pallas."""
    n, f_in = x.shape
    f_out = weight.shape[0]
    assert f_out <= F_PAD

    # ---- glue: O(E) degree normalization outside the kernel -----------------
    src = edge_index[0]
    dst = edge_index[1]
    deg = jax.ops.segment_sum(
        jnp.ones(src.shape, jnp.float32), dst, num_segments=n)
    d = jnp.where(deg > 0.0, jax.lax.rsqrt(deg), 0.0)                 # (N,)

    # ---- padded sizes / tile choice -----------------------------------------
    if n <= TILE_K:
        n_pad = max(_round_up(n, 256), 256)
        tm = min(TILE_M, n_pad)
        tk = n_pad
    else:
        n_pad = _round_up(n, TILE_K)
        tm = TILE_M
        tk = TILE_K

    # Raw edge counts, built directly in the streaming dtype (int8).
    a = jnp.zeros((n_pad, n_pad), jnp.int8).at[dst, src].add(1)

    # msg_hat = (X @ W^T) * d_j : O(N*F) work, off the critical path -> plain XLA,
    # emitted bf16 and lane-dense (F_PAD) so the hot kernel only streams A.
    xw = x.astype(jnp.float32) @ weight.T.astype(jnp.float32)        # (N, F_out)
    msg = xw * d[:, None]
    msg_pad = jnp.zeros((n_pad, F_PAD), jnp.bfloat16).at[:n, :f_out].set(
        msg.astype(jnp.bfloat16))

    d_pad = jnp.zeros((n_pad, 1), jnp.float32).at[:n, 0].set(d)
    b_pad = jnp.zeros((1, F_PAD), jnp.float32).at[0, :f_out].set(
        bias.astype(jnp.float32))

    # ---- VMEM budget (honest: output block is resident, not double-buffered
    # per-k; msg is fetched once but budgeted at 2 buffers to be safe) ---------
    vmem_bytes = (
        2 * tm * tk * 1            # A int8 tiles, double buffered (dominant)
        + 2 * n_pad * F_PAD * 2    # msg, resident bf16 (conservative x2)
        + 2 * tm * F_PAD * 4       # f32 output / accumulator block
        + 2 * tm * 128 * 4         # d column (lane-padded)
        + 2 * 128 * 4              # bias
    )
    vmem_limit = int(min(max(vmem_bytes + (4 << 20), 8 << 20), 48 << 20))

    out = pl.pallas_call(
        _gcn_agg_kernel,
        out_shape=jax.ShapeDtypeStruct((n_pad, F_PAD), jnp.float32),
        grid=(n_pad // tm, n_pad // tk),
        in_specs=[
            pl.BlockSpec((tm, tk), lambda i, k: (i, k)),          # A (int8)
            pl.BlockSpec((n_pad, F_PAD), lambda i, k: (0, 0)),    # msg, resident
            pl.BlockSpec((tm, 1), lambda i, k: (i, 0)),           # d_i column
            pl.BlockSpec((1, F_PAD), lambda i, k: (0, 0)),        # bias
        ],
        out_specs=pl.BlockSpec((tm, F_PAD), lambda i, k: (i, 0)),
        compiler_params=pltpu.CompilerParams(
            dimension_semantics=("parallel", "arbitrary"),
            vmem_limit_bytes=vmem_limit,
        ),
    )(a, msg_pad, d_pad, b_pad)

    return out[:n, :f_out]


def graph_layer_forward(x, edge_index, params, edge_attr=None, batch_index=None):
    """GraphLayer.forward with defaults (GCN, single hidden layer, no skip/norm/act)."""
    xout = gcn_conv_pallas(x, edge_index, params["weight"], params["bias"])
    return xout, edge_index, edge_attr


def _reference(x, edge_index, weight, bias):
    """Pure-JAX f32 reference of GCNConv for correctness check."""
    n = x.shape[0]
    src, dst = edge_index[0], edge_index[1]
    a = jnp.zeros((n, n), jnp.float32).at[dst, src].add(1.0)
    deg = a.sum(axis=1, keepdims=True)
    d = jnp.where(deg > 0.0, 1.0 / jnp.sqrt(deg), 0.0)
    xw = x @ weight.T
    return d * (a @ (d * xw)) + bias[None, :]


if __name__ == "__main__":
    key = jax.random.PRNGKey(0)
    k_x, k_w = jax.random.split(key)

    N, F_IN, F_HID = 16, 8, 32

    # node features
    x = jax.random.normal(k_x, (N, F_IN), dtype=jnp.float32)

    # deterministic edge_index: bidirectional ring over N nodes (shape (2, 2N))
    idx = jnp.arange(N, dtype=jnp.int32)
    nxt = (idx + 1) % N
    edge_index = jnp.stack(
        [jnp.concatenate([idx, nxt]), jnp.concatenate([nxt, idx])], axis=0
    )

    # GCNConv params: glorot-style weight (F_out, F_in), zero bias (F_out,)
    limit = jnp.sqrt(6.0 / (F_IN + F_HID))
    weight = jax.random.uniform(
        k_w, (F_HID, F_IN), minval=-limit, maxval=limit, dtype=jnp.float32
    )
    bias = jnp.zeros((F_HID,), dtype=jnp.float32)
    params = {"weight": weight, "bias": bias}

    out, ei_out, ea_out = graph_layer_forward(x, edge_index, params, edge_attr=None)
    out = jax.block_until_ready(out)

    ref = _reference(x, edge_index, weight, bias)
    assert out.shape == (N, F_HID)
    # A is streamed as exact int8 counts; the only rounding left is the bf16 msg
    # (f32 MXU accumulation), so tolerances stay comfortably inside 2e-2.
    assert jnp.allclose(out, ref, atol=2e-2, rtol=2e-2), "mismatch vs reference"
    assert ea_out is None

    print("KERNEL_OK")
</pallas_src>

<mosaic_0001>
module attributes {stable_mosaic.version = 11 : i64} {
  func.func @_gcn_agg_kernel(%arg0: i32, %arg1: i32, %arg2: memref<256x256xi8, #tpu.memory_space<vmem>>, %arg3: memref<256x128xbf16, #tpu.memory_space<vmem>>, %arg4: memref<256x1xf32, #tpu.memory_space<vmem>>, %arg5: memref<1x128xf32, #tpu.memory_space<vmem>>, %arg6: memref<256x128xf32, #tpu.memory_space<vmem>>) attributes {dimension_semantics = [#tpu.dimension_semantics<parallel>, #tpu.dimension_semantics<arbitrary>], iteration_bounds = array<i64: 1, 1>, scalar_prefetch = 0 : i64, scratch_operands = 0 : i64, tpu.core_type = #tpu.core_type<tc>, window_params = [{transform_indices = @transform_0, window_bounds = array<i64: 256, 256>}, {pipeline_mode = #tpu.pipeline_mode<synchronous>, transform_indices = @transform_1, window_bounds = array<i64: 256, 128>}, {transform_indices = @transform_2, window_bounds = array<i64: 256, 1>}, {pipeline_mode = #tpu.pipeline_mode<synchronous>, transform_indices = @transform_3, window_bounds = array<i64: 1, 128>}, {transform_indices = @transform_4, window_bounds = array<i64: 256, 128>}]} {
    %c0_i32 = arith.constant 0 : i32
    %0 = arith.cmpi eq, %arg1, %c0_i32 : i32
    %1 = arith.extui %0 : i1 to i32
    %c0_i32_0 = arith.constant 0 : i32
    %2 = arith.cmpi ne, %1, %c0_i32_0 : i32
    scf.if %2 {
      %cst_9 = arith.constant 0.000000e+00 : f32
      %17 = vector.broadcast %cst_9 : f32 to vector<256x128xf32>
      %c0_10 = arith.constant 0 : index
      %c0_11 = arith.constant 0 : index
      %18 = vector.load %arg6[%c0_10, %c0_11] : memref<256x128xf32, #tpu.memory_space<vmem>>, vector<256x128xf32>
      tpu.vector_store %arg6[%c0_10, %c0_11], %17 {strides = array<i32>} : memref<256x128xf32, #tpu.memory_space<vmem>>, vector<256x128xf32>,
    } else {
    }
    %c0 = arith.constant 0 : index
    %c0_1 = arith.constant 0 : index
    %3 = vector.load %arg2[%c0, %c0_1] : memref<256x256xi8, #tpu.memory_space<vmem>>, vector<256x256xi8>
    %4 = arith.sitofp %3 : vector<256x256xi8> to vector<256x256xf32>
    %5 = arith.truncf %4 : vector<256x256xf32> to vector<256x256xbf16>
    %c256_i32 = arith.constant 256 : i32
    %6 = arith.muli %arg1, %c256_i32 : i32
    %7 = tpu.assume_multiple %6, 256 : i32
    %8 = arith.index_cast %7 : i32 to index
    %c0_2 = arith.constant 0 : index
    %9 = vector.load %arg3[%8, %c0_2] : memref<256x128xbf16, #tpu.memory_space<vmem>>, vector<256x128xbf16>
    %c0_3 = arith.constant 0 : index
    %c0_4 = arith.constant 0 : index
    %10 = vector.load %arg6[%c0_3, %c0_4] : memref<256x128xf32, #tpu.memory_space<vmem>>, vector<256x128xf32>
    %cst = arith.constant dense<0.000000e+00> : vector<256x128xf32>
    %11 = tpu.matmul %5, %9, %cst {dimension_numbers = #tpu.dot_dimension_numbers<[1], [0], [0], [1], [0, 0, 1, 1], [], []>} : vector<256x256xbf16>, vector<256x128xbf16>, vector<256x128xf32> -> vector<256x128xf32>
    %12 = arith.addf %10, %11 : vector<256x128xf32>
    %c0_5 = arith.constant 0 : index
    %c0_6 = arith.constant 0 : index
    %13 = vector.load %arg6[%c0_5, %c0_6] : memref<256x128xf32, #tpu.memory_space<vmem>>, vector<256x128xf32>
    tpu.vector_store %arg6[%c0_5, %c0_6], %12 {strides = array<i32>} : memref<256x128xf32, #tpu.memory_space<vmem>>, vector<256x128xf32>,
    %c0_i32_7 = arith.constant 0 : i32
    %14 = arith.cmpi eq, %arg1, %c0_i32_7 : i32
    %15 = arith.extui %14 : i1 to i32
    %c0_i32_8 = arith.constant 0 : i32
    %16 = arith.cmpi ne, %15, %c0_i32_8 : i32
    scf.if %16 {
      %c0_9 = arith.constant 0 : index
      %c0_10 = arith.constant 0 : index
      %17 = vector.load %arg4[%c0_9, %c0_10] : memref<256x1xf32, #tpu.memory_space<vmem>>, vector<256x1xf32>
      %c0_11 = arith.constant 0 : index
      %c0_12 = arith.constant 0 : index
      %18 = vector.load %arg6[%c0_11, %c0_12] : memref<256x128xf32, #tpu.memory_space<vmem>>, vector<256x128xf32>
      %19 = vector.broadcast %17 : vector<256x1xf32> to vector<256x128xf32>
      %20 = arith.mulf %19, %18 : vector<256x128xf32>
      %c0_13 = arith.constant 0 : index
      %c0_14 = arith.constant 0 : index
      %21 = vector.load %arg5[%c0_13, %c0_14] : memref<1x128xf32, #tpu.memory_space<vmem>>, vector<1x128xf32>
      %22 = vector.broadcast %21 : vector<1x128xf32> to vector<256x128xf32>
      %23 = arith.addf %20, %22 : vector<256x128xf32>
      %c0_15 = arith.constant 0 : index
      %c0_16 = arith.constant 0 : index
      %24 = vector.load %arg6[%c0_15, %c0_16] : memref<256x128xf32, #tpu.memory_space<vmem>>, vector<256x128xf32>
      tpu.vector_store %arg6[%c0_15, %c0_16], %23 {strides = array<i32>} : memref<256x128xf32, #tpu.memory_space<vmem>>, vector<256x128xf32>,
    } else {
    }
    return
  }
  func.func @transform_0(%arg0: i32, %arg1: i32) -> (i32, i32) {
    %c0_i32 = arith.constant 0 : i32
    return %arg0, %arg1 : i32, i32
  }
  func.func @transform_1(%arg0: i32, %arg1: i32) -> (i32, i32) {
    %c0_i32 = arith.constant 0 : i32
    %c0_i32_0 = arith.constant 0 : i32
    %c0_i32_1 = arith.constant 0 : i32
    return %c0_i32, %c0_i32_0 : i32, i32
  }
  func.func @transform_2(%arg0: i32, %arg1: i32) -> (i32, i32) {
    %c0_i32 = arith.constant 0 : i32
    %c0_i32_0 = arith.constant 0 : i32
    return %arg0, %c0_i32 : i32, i32
  }
  func.func @transform_3(%arg0: i32, %arg1: i32) -> (i32, i32) {
    %c0_i32 = arith.constant 0 : i32
    %c0_i32_0 = arith.constant 0 : i32
    %c0_i32_1 = arith.constant 0 : i32
    return %c0_i32, %c0_i32_0 : i32, i32
  }
  func.func @transform_4(%arg0: i32, %arg1: i32) -> (i32, i32) {
    %c0_i32 = arith.constant 0 : i32
    %c0_i32_0 = arith.constant 0 : i32
    return %arg0, %c0_i32 : i32, i32
  }
}

</mosaic_0001>

<llo_original>
// kernel: tpu_custom_call.1
$region0: #{tpu_custom_call.1}
  #allocation0 [shape = 'u32[]', space=smem, size = 0x4, offset = 0x4, fixed_abs, tag = 'smem constant byte address 0x4 - core index']
  #allocation1 [shape = 'u32[72,128]{1,0:T(1,128)}', space=vmem, size = 0x9000, scoped, tag = 'internal scratch']
  %s0 = inlined_call_operand.vmem [shape: s8[256,256], index: 0, kind: input, shape index: {}]
  %s1 = inlined_call_operand.vmem [shape: bf16[256,128], index: 1, kind: input, shape index: {}]
  %s2 = inlined_call_operand.vmem [shape: f32[256,1], index: 2, kind: input, shape index: {}]
  %s3 = inlined_call_operand.vmem [shape: f32[1,128], index: 3, kind: input, shape index: {}]
  %s4 = inlined_call_operand.hbm [shape: f32[256,128], index: 4, kind: output, shape index: {}]
  %s5 = sld [smem:[#allocation0]]
  $region34: #{tpu_custom_call.1} parent=0
    _
  %s7 = ssub.s32 1, %s5
  %s8 = scalar_select 0, %s7, %s5
  $region1: #{tpu_custom_call.1} parent=0
    #allocation2 [shape = 'u8[131072]{0}', space=vmem, size = 0x20000, scoped, tag = 'output window, operand 0, single buffered']
    #allocation3 [shape = 's32[1]{0}', space=sflag, size = 0x4, scoped, tag = 'scoped memory for tpu_custom_call.1']
    %9 = vsyncpa [#allocation3], 0
    // Predicated region
    $region2: #{tpu_custom_call.1} parent=1 // pred_check
      _
    $region3: #{tpu_custom_call.1} parent=1 // pred_check_branch
      %11 = sbr.rel (0) target = $region5
    $region4: #{tpu_custom_call.1} parent=1 // pred_region
      _
    $region5: #{tpu_custom_call.1} parent=1 // pred_fallthru
      _
    // Predicated region
    $region6: #{tpu_custom_call.1} parent=1 // pred_check
      _
    $region7: #{tpu_custom_call.1} parent=1 // pred_check_branch
      %13 = sbr.rel (0) target = $region9
    $region8: #{tpu_custom_call.1} parent=1 // pred_region
      _
    $region9: #{tpu_custom_call.1} parent=1 // pred_fallthru
      _
    // Predicated region
    $region10: #{tpu_custom_call.1} parent=1 // pred_check
      _
    $region11: #{tpu_custom_call.1} parent=1 // pred_check_branch
      %15 = sbr.rel (0) target = $region13
    $region12: #{tpu_custom_call.1} parent=1 // pred_region
      _
    $region13: #{tpu_custom_call.1} parent=1 // pred_fallthru
      _
    // Predicated region
    $region14: #{tpu_custom_call.1} parent=1 // pred_check
      _
    $region15: #{tpu_custom_call.1} parent=1 // pred_check_branch
      %17 = sbr.rel (0) target = $region17
    $region16: #{tpu_custom_call.1} parent=1 // pred_region
      _
    $region17: #{tpu_custom_call.1} parent=1 // pred_fallthru
      _
    %p18 = scmp.eq.s32.totalorder 0, 0
    // Predicated region
    $region18: #{tpu_custom_call.1} parent=1 // pred_check
      %p19 = pneg %p18
    $region19: #{tpu_custom_call.1} parent=1 // pred_check_branch
      %21 = sbr.rel (%p19) target = $region21
    $region20: #{tpu_custom_call.1} parent=1 // pred_region
      %22 = vst [vmem:[#allocation2] sm:$0xff] 0.0
      %23 = vst [vmem:[#allocation2 + $0x8] sm:$0xff] 0.0
      %24 = vst [vmem:[#allocation2 + $0x10] sm:$0xff] 0.0
      %25 = vst [vmem:[#allocation2 + $0x18] sm:$0xff] 0.0
      %26 = vst [vmem:[#allocation2 + $0x20] sm:$0xff] 0.0
      %27 = vst [vmem:[#allocation2 + $0x28] sm:$0xff] 0.0
      %28 = vst [vmem:[#allocation2 + $0x30] sm:$0xff] 0.0
      %29 = vst [vmem:[#allocation2 + $0x38] sm:$0xff] 0.0
      %30 = vst [vmem:[#allocation2 + $0x40] sm:$0xff] 0.0
      %31 = vst [vmem:[#allocation2 + $0x48] sm:$0xff] 0.0
      %32 = vst [vmem:[#allocation2 + $0x50] sm:$0xff] 0.0
      %33 = vst [vmem:[#allocation2 + $0x58] sm:$0xff] 0.0
      %34 = vst [vmem:[#allocation2 + $0x60] sm:$0xff] 0.0
      %35 = vst [vmem:[#allocation2 + $0x68] sm:$0xff] 0.0
      %36 = vst [vmem:[#allocation2 + $0x70] sm:$0xff] 0.0
      %37 = vst [vmem:[#allocation2 + $0x78] sm:$0xff] 0.0
      %38 = vst [vmem:[#allocation2 + $0x80] sm:$0xff] 0.0
      %39 = vst [vmem:[#allocation2 + $0x88] sm:$0xff] 0.0
      %40 = vst [vmem:[#allocation2 + $0x90] sm:$0xff] 0.0
      %41 = vst [vmem:[#allocation2 + $0x98] sm:$0xff] 0.0
      %42 = vst [vmem:[#allocation2 + $0xa0] sm:$0xff] 0.0
      %43 = vst [vmem:[#allocation2 + $0xa8] sm:$0xff] 0.0
      %44 = vst [vmem:[#allocation2 + $0xb0] sm:$0xff] 0.0
      %45 = vst [vmem:[#allocation2 + $0xb8] sm:$0xff] 0.0
      %46 = vst [vmem:[#allocation2 + $0xc0] sm:$0xff] 0.0
      %47 = vst [vmem:[#allocation2 + $0xc8] sm:$0xff] 0.0
      %48 = vst [vmem:[#allocation2 + $0xd0] sm:$0xff] 0.0
      %49 = vst [vmem:[#allocation2 + $0xd8] sm:$0xff] 0.0
      %50 = vst [vmem:[#allocation2 + $0xe0] sm:$0xff] 0.0
      %51 = vst [vmem:[#allocation2 + $0xe8] sm:$0xff] 0.0
      %52 = vst [vmem:[#allocation2 + $0xf0] sm:$0xff] 0.0
      %53 = vst [vmem:[#allocation2 + $0xf8] sm:$0xff] 0.0
    $region21: #{tpu_custom_call.1} parent=1 // pred_fallthru
      _
    %v54 = vld [vmem:[%s0] sm:$0xff]
    %v55 = vld [vmem:[%s0 + $0x8] sm:$0xff]
    %v56 = vld [vmem:[%s0 + $0x10] sm:$0xff]
    %v57 = vld [vmem:[%s0 + $0x18] sm:$0xff]
    %v58 = vld [vmem:[%s0 + $0x20] sm:$0xff]
    %v59 = vld [vmem:[%s0 + $0x28] sm:$0xff]
    %v60 = vld [vmem:[%s0 + $0x30] sm:$0xff]
    %v61 = vld [vmem:[%s0 + $0x38] sm:$0xff]
    %v62 = vld [vmem:[%s0 + $0x40] sm:$0xff]
    %v63 = vld [vmem:[%s0 + $0x48] sm:$0xff]
    %v64 = vld [vmem:[%s0 + $0x50] sm:$0xff]
    %v65 = vld [vmem:[%s0 + $0x58] sm:$0xff]
    %v66 = vld [vmem:[%s0 + $0x60] sm:$0xff]
    %v67 = vld [vmem:[%s0 + $0x68] sm:$0xff]
    %v68 = vld [vmem:[%s0 + $0x70] sm:$0xff]
    %v69 = vld [vmem:[%s0 + $0x78] sm:$0xff]
    %v70 = vunpack.c.0.s8 %v54
    %v71 = vunpack.c.0.s8 %v55
    %v72 = vunpack.c.1.s8 %v54
    %v73 = vunpack.c.1.s8 %v55
    %v74 = vunpack.c.2.s8 %v54
    %v75 = vunpack.c.2.s8 %v55
    %v76 = vunpack.c.3.s8 %v54
    %v77 = vunpack.c.3.s8 %v55
    %v78 = vunpack.c.0.s8 %v56
    %v79 = vunpack.c.0.s8 %v57
    %v80 = vunpack.c.1.s8 %v56
    %v81 = vunpack.c.1.s8 %v57
    %v82 = vunpack.c.2.s8 %v56
    %v83 = vunpack.c.2.s8 %v57
    %v84 = vunpack.c.3.s8 %v56
    %v85 = vunpack.c.3.s8 %v57
    %v86 = vunpack.c.0.s8 %v58
    %v87 = vunpack.c.0.s8 %v59
    %v88 = vunpack.c.1.s8 %v58
    %v89 = vunpack.c.1.s8 %v59
    %v90 = vunpack.c.2.s8 %v58
    %v91 = vunpack.c.2.s8 %v59
    %v92 = vunpack.c.3.s8 %v58
    %v93 = vunpack.c.3.s8 %v59
    %v94 = vunpack.c.0.s8 %v60
    %v95 = vunpack.c.0.s8 %v61
    %v96 = vunpack.c.1.s8 %v60
    %v97 = vunpack.c.1.s8 %v61
    %v98 = vunpack.c.2.s8 %v60
    %v99 = vunpack.c.2.s8 %v61
    %v100 = vunpack.c.3.s8 %v60
    %v101 = vunpack.c.3.s8 %v61
    %v102 = vunpack.c.0.s8 %v62
    %v103 = vunpack.c.0.s8 %v63
    %v104 = vunpack.c.1.s8 %v62
    %v105 = vunpack.c.1.s8 %v63
    %v106 = vunpack.c.2.s8 %v62
    %v107 = vunpack.c.2.s8 %v63
    %v108 = vunpack.c.3.s8 %v62
    %v109 = vunpack.c.3.s8 %v63
    %v110 = vunpack.c.0.s8 %v64
    %v111 = vunpack.c.0.s8 %v65
    %v112 = vunpack.c.1.s8 %v64
    %v113 = vunpack.c.1.s8 %v65
    %v114 = vunpack.c.2.s8 %v64
    %v115 = vunpack.c.2.s8 %v65
    %v116 = vunpack.c.3.s8 %v64
    %v117 = vunpack.c.3.s8 %v65
    %v118 = vunpack.c.0.s8 %v66
    %v119 = vunpack.c.0.s8 %v67
    %v120 = vunpack.c.1.s8 %v66
    %v121 = vunpack.c.1.s8 %v67
    %v122 = vunpack.c.2.s8 %v66
    %v123 = vunpack.c.2.s8 %v67
    %v124 = vunpack.c.3.s8 %v66
    %v125 = vunpack.c.3.s8 %v67
    %v126 = vunpack.c.0.s8 %v68
    %v127 = vunpack.c.0.s8 %v69
    %v128 = vunpack.c.1.s8 %v68
    %v129 = vunpack.c.1.s8 %v69
    %v130 = vunpack.c.2.s8 %v68
    %v131 = vunpack.c.2.s8 %v69
    %v132 = vunpack.c.3.s8 %v68
    %v133 = vunpack.c.3.s8 %v69
    %v134 = vcvt.s32.f32 %v70
    %v135 = vcvt.s32.f32 %v71
    %v136 = vcvt.s32.f32 %v72
    %v137 = vcvt.s32.f32 %v73
    %v138 = vcvt.s32.f32 %v74
    %v139 = vcvt.s32.f32 %v75
    %v140 = vcvt.s32.f32 %v76
    %v141 = vcvt.s32.f32 %v77
    %v142 = vcvt.s32.f32 %v78
    %v143 = vcvt.s32.f32 %v79
    %v144 = vcvt.s32.f32 %v80
    %v145 = vcvt.s32.f32 %v81
    %v146 = vcvt.s32.f32 %v82
    %v147 = vcvt.s32.f32 %v83
    %v148 = vcvt.s32.f32 %v84
    %v149 = vcvt.s32.f32 %v85
    %v150 = vcvt.s32.f32 %v86
    %v151 = vcvt.s32.f32 %v87
    %v152 = vcvt.s32.f32 %v88
    %v153 = vcvt.s32.f32 %v89
    %v154 = vcvt.s32.f32 %v90
    %v155 = vcvt.s32.f32 %v91
    %v156 = vcvt.s32.f32 %v92
    %v157 = vcvt.s32.f32 %v93
    %v158 = vcvt.s32.f32 %v94
    %v159 = vcvt.s32.f32 %v95
    %v160 = vcvt.s32.f32 %v96
    %v161 = vcvt.s32.f32 %v97
    %v162 = vcvt.s32.f32 %v98
    %v163 = vcvt.s32.f32 %v99
    %v164 = vcvt.s32.f32 %v100
    %v165 = vcvt.s32.f32 %v101
    %v166 = vcvt.s32.f32 %v102
    %v167 = vcvt.s32.f32 %v103
    %v168 = vcvt.s32.f32 %v104
    %v169 = vcvt.s32.f32 %v105
    %v170 = vcvt.s32.f32 %v106
    %v171 = vcvt.s32.f32 %v107
    %v172 = vcvt.s32.f32 %v108
    %v173 = vcvt.s32.f32 %v109
    %v174 = vcvt.s32.f32 %v110
    %v175 = vcvt.s32.f32 %v111
    %v176 = vcvt.s32.f32 %v112
    %v177 = vcvt.s32.f32 %v113
    %v178 = vcvt.s32.f32 %v114
    %v179 = vcvt.s32.f32 %v115
    %v180 = vcvt.s32.f32 %v116
    %v181 = vcvt.s32.f32 %v117
    %v182 = vcvt.s32.f32 %v118
    %v183 = vcvt.s32.f32 %v119
    %v184 = vcvt.s32.f32 %v120
    %v185 = vcvt.s32.f32 %v121
    %v186 = vcvt.s32.f32 %v122
    %v187 = vcvt.s32.f32 %v123
    %v188 = vcvt.s32.f32 %v124
    %v189 = vcvt.s32.f32 %v125
    %v190 = vcvt.s32.f32 %v126
    %v191 = vcvt.s32.f32 %v127
    %v192 = vcvt.s32.f32 %v128
    %v193 = vcvt.s32.f32 %v129
    %v194 = vcvt.s32.f32 %v130
    %v195 = vcvt.s32.f32 %v131
    %v196 = vcvt.s32.f32 %v132
    %v197 = vcvt.s32.f32 %v133
    %v198 = vpack.c.bf16 %v136, %v134
    %v199 = vpack.c.bf16 %v137, %v135
    %v200 = vpack.c.bf16 %v140, %v138
    %v201 = vpack.c.bf16 %v141, %v139
    %v202 = vpack.c.bf16 %v144, %v142
    %v203 = vpack.c.bf16 %v145, %v143
    %v204 = vpack.c.bf16 %v148, %v146
    %v205 = vpack.c.bf16 %v149, %v147
    %v206 = vpack.c.bf16 %v152, %v150
    %v207 = vpack.c.bf16 %v153, %v151
    %v208 = vpack.c.bf16 %v156, %v154
    %v209 = vpack.c.bf16 %v157, %v155
    %v210 = vpack.c.bf16 %v160, %v158
    %v211 = vpack.c.bf16 %v161, %v159
    %v212 = vpack.c.bf16 %v164, %v162
    %v213 = vpack.c.bf16 %v165, %v163
    %v214 = vpack.c.bf16 %v168, %v166
    %v215 = vpack.c.bf16 %v169, %v167
    %v216 = vpack.c.bf16 %v172, %v170
    %v217 = vpack.c.bf16 %v173, %v171
    %v218 = vpack.c.bf16 %v176, %v174
    %v219 = vpack.c.bf16 %v177, %v175
    %v220 = vpack.c.bf16 %v180, %v178
    %v221 = vpack.c.bf16 %v181, %v179
    %v222 = vpack.c.bf16 %v184, %v182
    %v223 = vpack.c.bf16 %v185, %v183
    %v224 = vpack.c.bf16 %v188, %v186
    %v225 = vpack.c.bf16 %v189, %v187
    %v226 = vpack.c.bf16 %v192, %v190
    %v227 = vpack.c.bf16 %v193, %v191
    %v228 = vpack.c.bf16 %v196, %v194
    %v229 = vpack.c.bf16 %v197, %v195
    %s230 = smul.u32 0, 256
    %s231 = sshra.s32 %s230, 3
    %s232 = sand.u32 %s230, 7
    %s233 = smul.addr %s231, 4
    %s234 = scalar_lea.vmem %s1, %s233
    %v235 = vld [vmem:[%s234] sm:$0xf]
    %v236 = vld [vmem:[%s234 + $0x4] sm:$0xf]
    %v237 = vld [vmem:[%s234 + $0x8] sm:$0xf]
    %v238 = vld [vmem:[%s234 + $0xc] sm:$0xf]
    %v239 = vld [vmem:[%s234 + $0x10] sm:$0xf]
    %v240 = vld [vmem:[%s234 + $0x14] sm:$0xf]
    %v241 = vld [vmem:[%s234 + $0x18] sm:$0xf]
    %v242 = vld [vmem:[%s234 + $0x1c] sm:$0xf]
    %v243 = vld [vmem:[%s234 + $0x20] sm:$0xf]
    %v244 = vld [vmem:[%s234 + $0x24] sm:$0xf]
    %v245 = vld [vmem:[%s234 + $0x28] sm:$0xf]
    %v246 = vld [vmem:[%s234 + $0x2c] sm:$0xf]
    %v247 = vld [vmem:[%s234 + $0x30] sm:$0xf]
    %v248 = vld [vmem:[%s234 + $0x34] sm:$0xf]
    %v249 = vld [vmem:[%s234 + $0x38] sm:$0xf]
    %v250 = vld [vmem:[%s234 + $0x3c] sm:$0xf]
    %v251 = vld [vmem:[%s234 + $0x40] sm:$0xf]
    %v252 = vld [vmem:[%s234 + $0x44] sm:$0xf]
    %v253 = vld [vmem:[%s234 + $0x48] sm:$0xf]
    %v254 = vld [vmem:[%s234 + $0x4c] sm:$0xf]
    %v255 = vld [vmem:[%s234 + $0x50] sm:$0xf]
    %v256 = vld [vmem:[%s234 + $0x54] sm:$0xf]
    %v257 = vld [vmem:[%s234 + $0x58] sm:$0xf]
    %v258 = vld [vmem:[%s234 + $0x5c] sm:$0xf]
    %v259 = vld [vmem:[%s234 + $0x60] sm:$0xf]
    %v260 = vld [vmem:[%s234 + $0x64] sm:$0xf]
    %v261 = vld [vmem:[%s234 + $0x68] sm:$0xf]
    %v262 = vld [vmem:[%s234 + $0x6c] sm:$0xf]
    %v263 = vld [vmem:[%s234 + $0x70] sm:$0xf]
    %v264 = vld [vmem:[%s234 + $0x74] sm:$0xf]
    %v265 = vld [vmem:[%s234 + $0x78] sm:$0xf]
    %v266 = vld [vmem:[%s234 + $0x7c] sm:$0xf]
    %v267 = vld [vmem:[#allocation2] sm:$0xff]
    %v268 = vld [vmem:[#allocation2 + $0x8] sm:$0xff]
    %v269 = vld [vmem:[#allocation2 + $0x10] sm:$0xff]
    %v270 = vld [vmem:[#allocation2 + $0x18] sm:$0xff]
    %v271 = vld [vmem:[#allocation2 + $0x20] sm:$0xff]
    %v272 = vld [vmem:[#allocation2 + $0x28] sm:$0xff]
    %v273 = vld [vmem:[#allocation2 + $0x30] sm:$0xff]
    %v274 = vld [vmem:[#allocation2 + $0x38] sm:$0xff]
    %v275 = vld [vmem:[#allocation2 + $0x40] sm:$0xff]
    %v276 = vld [vmem:[#allocation2 + $0x48] sm:$0xff]
    %v277 = vld [vmem:[#allocation2 + $0x50] sm:$0xff]
    %v278 = vld [vmem:[#allocation2 + $0x58] sm:$0xff]
    %v279 = vld [vmem:[#allocation2 + $0x60] sm:$0xff]
    %v280 = vld [vmem:[#allocation2 + $0x68] sm:$0xff]
    %v281 = vld [vmem:[#allocation2 + $0x70] sm:$0xff]
    %v282 = vld [vmem:[#allocation2 + $0x78] sm:$0xff]
    %v283 = vld [vmem:[#allocation2 + $0x80] sm:$0xff]
    %v284 = vld [vmem:[#allocation2 + $0x88] sm:$0xff]
    %v285 = vld [vmem:[#allocation2 + $0x90] sm:$0xff]
    %v286 = vld [vmem:[#allocation2 + $0x98] sm:$0xff]
    %v287 = vld [vmem:[#allocation2 + $0xa0] sm:$0xff]
    %v288 = vld [vmem:[#allocation2 + $0xa8] sm:$0xff]
    %v289 = vld [vmem:[#allocation2 + $0xb0] sm:$0xff]
    %v290 = vld [vmem:[#allocation2 + $0xb8] sm:$0xff]
    %v291 = vld [vmem:[#allocation2 + $0xc0] sm:$0xff]
    %v292 = vld [vmem:[#allocation2 + $0xc8] sm:$0xff]
    %v293 = vld [vmem:[#allocation2 + $0xd0] sm:$0xff]
    %v294 = vld [vmem:[#allocation2 + $0xd8] sm:$0xff]
    %v295 = vld [vmem:[#allocation2 + $0xe0] sm:$0xff]
    %v296 = vld [vmem:[#allocation2 + $0xe8] sm:$0xff]
    %v297 = vld [vmem:[#allocation2 + $0xf0] sm:$0xff]
    %v298 = vld [vmem:[#allocation2 + $0xf8] sm:$0xff]
    %v331 = vunpack.c.l.b16 %v235
    %v332 = vunpack.c.l.b16 %v236
    %v333 = vunpack.c.l.b16 %v237
    %v334 = vunpack.c.l.b16 %v238
    %v335 = vunpack.c.l.b16 %v239
    %v336 = vunpack.c.l.b16 %v240
    %v337 = vunpack.c.l.b16 %v241
    %v338 = vunpack.c.l.b16 %v242
    %v339 = vunpack.c.l.b16 %v243
    %v340 = vunpack.c.l.b16 %v244
    %v341 = vunpack.c.l.b16 %v245
    %v342 = vunpack.c.l.b16 %v246
    %v343 = vunpack.c.l.b16 %v247
    %v344 = vunpack.c.l.b16 %v248
    %v345 = vunpack.c.l.b16 %v249
    %v346 = vunpack.c.l.b16 %v250
    %v347 = vunpack.c.l.b16 %v251
    %v348 = vunpack.c.l.b16 %v252
    %v349 = vunpack.c.l.b16 %v253
    %v350 = vunpack.c.l.b16 %v254
    %v351 = vunpack.c.l.b16 %v255
    %v352 = vunpack.c.l.b16 %v256
    %v353 = vunpack.c.l.b16 %v257
    %v354 = vunpack.c.l.b16 %v258
    %v355 = vunpack.c.l.b16 %v259
    %v356 = vunpack.c.l.b16 %v260
    %v357 = vunpack.c.l.b16 %v261
    %v358 = vunpack.c.l.b16 %v262
    %v359 = vunpack.c.l.b16 %v263
    %v360 = vunpack.c.l.b16 %v264
    %v361 = vunpack.c.l.b16 %v265
    %v362 = vunpack.c.l.b16 %v266
    %v363 = vpack.c.b16 %v332, %v331
    %v364 = vpack.c.b16 %v334, %v333
    %v365 = vpack.c.b16 %v336, %v335
    %v366 = vpack.c.b16 %v338, %v337
    %v367 = vpack.c.b16 %v340, %v339
    %v368 = vpack.c.b16 %v342, %v341
    %v369 = vpack.c.b16 %v344, %v343
    %v370 = vpack.c.b16 %v346, %v345
    %v371 = vpack.c.b16 %v348, %v347
    %v372 = vpack.c.b16 %v350, %v349
    %v373 = vpack.c.b16 %v352, %v351
    %v374 = vpack.c.b16 %v354, %v353
    %v375 = vpack.c.b16 %v356, %v355
    %v376 = vpack.c.b16 %v358, %v357
    %v377 = vpack.c.b16 %v360, %v359
    %v378 = vpack.c.b16 %v362, %v361
    %395 = vmatpush.bf16.msra.mxu0 %v370
    %396 = vmatpush.bf16.msra.mxu0 %v369
    %397 = vmatpush.bf16.msra.mxu0 %v368
    %398 = vmatpush.bf16.msra.mxu0 %v367
    %399 = vmatpush.bf16.msra.mxu0 %v366
    %400 = vmatpush.bf16.msra.mxu0 %v365
    %401 = vmatpush.bf16.msra.mxu0 %v364
    %402 = vmatpush.bf16.msra.mxu0 %v363
    %403 = vmatmul.bf16.gmra.mxu0 %v198
    %v404 = vpop.f32.mrf.mxu0
    %v405 = vadd.f32 0.0, %v404
    %v406 = vpop.f32.mrf.mxu0
    %v407 = vadd.f32 0.0, %v406
    %408 = vmatmul.bf16.gmra.mxu0 %v200
    %v409 = vpop.f32.mrf.mxu0
    %v410 = vadd.f32 0.0, %v409
    %v411 = vpop.f32.mrf.mxu0
    %v412 = vadd.f32 0.0, %v411
    %413 = vmatmul.bf16.gmra.mxu0 %v202
    %v414 = vpop.f32.mrf.mxu0
    %v415 = vadd.f32 0.0, %v414
    %v416 = vpop.f32.mrf.mxu0
    %v417 = vadd.f32 0.0, %v416
    %418 = vmatmul.bf16.gmra.mxu0 %v204
    %v419 = vpop.f32.mrf.mxu0
    %v420 = vadd.f32 0.0, %v419
    %v421 = vpop.f32.mrf.mxu0
    %v422 = vadd.f32 0.0, %v421
    %423 = vmatmul.bf16.gmra.mxu0 %v206
    %v424 = vpop.f32.mrf.mxu0
    %v425 = vadd.f32 0.0, %v424
    %v426 = vpop.f32.mrf.mxu0
    %v427 = vadd.f32 0.0, %v426
    %428 = vmatmul.bf16.gmra.mxu0 %v208
    %v429 = vpop.f32.mrf.mxu0
    %v430 = vadd.f32 0.0, %v429
    %v431 = vpop.f32.mrf.mxu0
    %v432 = vadd.f32 0.0, %v431
    %433 = vmatmul.bf16.gmra.mxu0 %v210
    %v434 = vpop.f32.mrf.mxu0
    %v435 = vadd.f32 0.0, %v434
    %v436 = vpop.f32.mrf.mxu0
    %v437 = vadd.f32 0.0, %v436
    %438 = vmatmul.bf16.gmra.mxu0 %v212
    %v439 = vpop.f32.mrf.mxu0
    %v440 = vadd.f32 0.0, %v439
    %v441 = vpop.f32.mrf.mxu0
    %v442 = vadd.f32 0.0, %v441
    %443 = vmatmul.bf16.gmra.mxu0 %v214
    %v444 = vpop.f32.mrf.mxu0
    %v445 = vadd.f32 0.0, %v444
    %v446 = vpop.f32.mrf.mxu0
    %v447 = vadd.f32 0.0, %v446
    %448 = vmatmul.bf16.gmra.mxu0 %v216
    %v449 = vpop.f32.mrf.mxu0
    %v450 = vadd.f32 0.0, %v449
    %v451 = vpop.f32.mrf.mxu0
    %v452 = vadd.f32 0.0, %v451
    %453 = vmatmul.bf16.gmra.mxu0 %v218
    %v454 = vpop.f32.mrf.mxu0
    %v455 = vadd.f32 0.0, %v454
    %v456 = vpop.f32.mrf.mxu0
    %v457 = vadd.f32 0.0, %v456
    %458 = vmatmul.bf16.gmra.mxu0 %v220
    %v459 = vpop.f32.mrf.mxu0
    %v460 = vadd.f32 0.0, %v459
    %v461 = vpop.f32.mrf.mxu0
    %v462 = vadd.f32 0.0, %v461
    %463 = vmatmul.bf16.gmra.mxu0 %v222
    %v464 = vpop.f32.mrf.mxu0
    %v465 = vadd.f32 0.0, %v464
    %v466 = vpop.f32.mrf.mxu0
    %v467 = vadd.f32 0.0, %v466
    %468 = vmatmul.bf16.gmra.mxu0 %v224
    %v469 = vpop.f32.mrf.mxu0
    %v470 = vadd.f32 0.0, %v469
    %v471 = vpop.f32.mrf.mxu0
    %v472 = vadd.f32 0.0, %v471
    %473 = vmatmul.bf16.gmra.mxu0 %v226
    %v474 = vpop.f32.mrf.mxu0
    %v475 = vadd.f32 0.0, %v474
    %v476 = vpop.f32.mrf.mxu0
    %v477 = vadd.f32 0.0, %v476
    %478 = vmatmul.bf16.gmra.mxu0 %v228
    %v479 = vpop.f32.mrf.mxu0
    %v480 = vadd.f32 0.0, %v479
    %v481 = vpop.f32.mrf.mxu0
    %v482 = vadd.f32 0.0, %v481
    %483 = vdwg.mxu0
    %484 = vmatpush.bf16.msra.mxu0 %v378
    %485 = vmatpush.bf16.msra.mxu0 %v377
    %486 = vmatpush.bf16.msra.mxu0 %v376
    %487 = vmatpush.bf16.msra.mxu0 %v375
    %488 = vmatpush.bf16.msra.mxu0 %v374
    %489 = vmatpush.bf16.msra.mxu0 %v373
    %490 = vmatpush.bf16.msra.mxu0 %v372
    %491 = vmatpush.bf16.msra.mxu0 %v371
    %492 = vmatmul.bf16.gmra.mxu0 %v199
    %v493 = vpop.f32.mrf.mxu0
    %v494 = vadd.f32 %v405, %v493
    %v495 = vpop.f32.mrf.mxu0
    %v496 = vadd.f32 %v407, %v495
    %497 = vmatmul.bf16.gmra.mxu0 %v201
    %v498 = vpop.f32.mrf.mxu0
    %v499 = vadd.f32 %v410, %v498
    %v500 = vpop.f32.mrf.mxu0
    %v501 = vadd.f32 %v412, %v500
    %502 = vmatmul.bf16.gmra.mxu0 %v203
    %v503 = vpop.f32.mrf.mxu0
    %v504 = vadd.f32 %v415, %v503
    %v505 = vpop.f32.mrf.mxu0
    %v506 = vadd.f32 %v417, %v505
    %507 = vmatmul.bf16.gmra.mxu0 %v205
    %v508 = vpop.f32.mrf.mxu0
    %v509 = vadd.f32 %v420, %v508
    %v510 = vpop.f32.mrf.mxu0
    %v511 = vadd.f32 %v422, %v510
    %512 = vmatmul.bf16.gmra.mxu0 %v207
    %v513 = vpop.f32.mrf.mxu0
    %v514 = vadd.f32 %v425, %v513
    %v515 = vpop.f32.mrf.mxu0
    %v516 = vadd.f32 %v427, %v515
    %517 = vmatmul.bf16.gmra.mxu0 %v209
    %v518 = vpop.f32.mrf.mxu0
    %v519 = vadd.f32 %v430, %v518
    %v520 = vpop.f32.mrf.mxu0
    %v521 = vadd.f32 %v432, %v520
    %522 = vmatmul.bf16.gmra.mxu0 %v211
    %v523 = vpop.f32.mrf.mxu0
    %v524 = vadd.f32 %v435, %v523
    %v525 = vpop.f32.mrf.mxu0
    %v526 = vadd.f32 %v437, %v525
    %527 = vmatmul.bf16.gmra.mxu0 %v213
    %v528 = vpop.f32.mrf.mxu0
    %v529 = vadd.f32 %v440, %v528
    %v530 = vpop.f32.mrf.mxu0
    %v531 = vadd.f32 %v442, %v530
    %532 = vmatmul.bf16.gmra.mxu0 %v215
    %v533 = vpop.f32.mrf.mxu0
    %v534 = vadd.f32 %v445, %v533
    %v535 = vpop.f32.mrf.mxu0
    %v536 = vadd.f32 %v447, %v535
    %537 = vmatmul.bf16.gmra.mxu0 %v217
    %v538 = vpop.f32.mrf.mxu0
    %v539 = vadd.f32 %v450, %v538
    %v540 = vpop.f32.mrf.mxu0
    %v541 = vadd.f32 %v452, %v540
    %542 = vmatmul.bf16.gmra.mxu0 %v219
    %v543 = vpop.f32.mrf.mxu0
    %v544 = vadd.f32 %v455, %v543
    %v545 = vpop.f32.mrf.mxu0
    %v546 = vadd.f32 %v457, %v545
    %547 = vmatmul.bf16.gmra.mxu0 %v221
    %v548 = vpop.f32.mrf.mxu0
    %v549 = vadd.f32 %v460, %v548
    %v550 = vpop.f32.mrf.mxu0
    %v551 = vadd.f32 %v462, %v550
    %552 = vmatmul.bf16.gmra.mxu0 %v223
    %v553 = vpop.f32.mrf.mxu0
    %v554 = vadd.f32 %v465, %v553
    %v555 = vpop.f32.mrf.mxu0
    %v556 = vadd.f32 %v467, %v555
    %557 = vmatmul.bf16.gmra.mxu0 %v225
    %v558 = vpop.f32.mrf.mxu0
    %v559 = vadd.f32 %v470, %v558
    %v560 = vpop.f32.mrf.mxu0
    %v561 = vadd.f32 %v472, %v560
    %562 = vmatmul.bf16.gmra.mxu0 %v227
    %v563 = vpop.f32.mrf.mxu0
    %v564 = vadd.f32 %v475, %v563
    %v565 = vpop.f32.mrf.mxu0
    %v566 = vadd.f32 %v477, %v565
    %567 = vmatmul.bf16.gmra.mxu0 %v229
    %v568 = vpop.f32.mrf.mxu0
    %v569 = vadd.f32 %v480, %v568
    %v570 = vpop.f32.mrf.mxu0
    %v571 = vadd.f32 %v482, %v570
    %572 = vdwg.mxu0
    %v573 = vadd.f32 %v267, %v494
    %v574 = vadd.f32 %v268, %v496
    %v575 = vadd.f32 %v269, %v499
    %v576 = vadd.f32 %v270, %v501
    %v577 = vadd.f32 %v271, %v504
    %v578 = vadd.f32 %v272, %v506
    %v579 = vadd.f32 %v273, %v509
    %v580 = vadd.f32 %v274, %v511
    %v581 = vadd.f32 %v275, %v514
    %v582 = vadd.f32 %v276, %v516
    %v583 = vadd.f32 %v277, %v519
    %v584 = vadd.f32 %v278, %v521
    %v585 = vadd.f32 %v279, %v524
    %v586 = vadd.f32 %v280, %v526
    %v587 = vadd.f32 %v281, %v529
    %v588 = vadd.f32 %v282, %v531
    %v589 = vadd.f32 %v283, %v534
    %v590 = vadd.f32 %v284, %v536
    %v591 = vadd.f32 %v285, %v539
    %v592 = vadd.f32 %v286, %v541
    %v593 = vadd.f32 %v287, %v544
    %v594 = vadd.f32 %v288, %v546
    %v595 = vadd.f32 %v289, %v549
    %v596 = vadd.f32 %v290, %v551
    %v597 = vadd.f32 %v291, %v554
    %v598 = vadd.f32 %v292, %v556
    %v599 = vadd.f32 %v293, %v559
    %v600 = vadd.f32 %v294, %v561
    %v601 = vadd.f32 %v295, %v564
    %v602 = vadd.f32 %v296, %v566
    %v603 = vadd.f32 %v297, %v569
    %v604 = vadd.f32 %v298, %v571
    %605 = vst [vmem:[#allocation2] sm:$0xff] %v573
    %606 = vst [vmem:[#allocation2 + $0x8] sm:$0xff] %v574
    %607 = vst [vmem:[#allocation2 + $0x10] sm:$0xff] %v575
    %608 = vst [vmem:[#allocation2 + $0x18] sm:$0xff] %v576
    %609 = vst [vmem:[#allocation2 + $0x20] sm:$0xff] %v577
    %610 = vst [vmem:[#allocation2 + $0x28] sm:$0xff] %v578
    %611 = vst [vmem:[#allocation2 + $0x30] sm:$0xff] %v579
    %612 = vst [vmem:[#allocation2 + $0x38] sm:$0xff] %v580
    %613 = vst [vmem:[#allocation2 + $0x40] sm:$0xff] %v581
    %614 = vst [vmem:[#allocation2 + $0x48] sm:$0xff] %v582
    %615 = vst [vmem:[#allocation2 + $0x50] sm:$0xff] %v583
    %616 = vst [vmem:[#allocation2 + $0x58] sm:$0xff] %v584
    %617 = vst [vmem:[#allocation2 + $0x60] sm:$0xff] %v585
    %618 = vst [vmem:[#allocation2 + $0x68] sm:$0xff] %v586
    %619 = vst [vmem:[#allocation2 + $0x70] sm:$0xff] %v587
    %620 = vst [vmem:[#allocation2 + $0x78] sm:$0xff] %v588
    %621 = vst [vmem:[#allocation2 + $0x80] sm:$0xff] %v589
    %622 = vst [vmem:[#allocation2 + $0x88] sm:$0xff] %v590
    %623 = vst [vmem:[#allocation2 + $0x90] sm:$0xff] %v591
    %624 = vst [vmem:[#allocation2 + $0x98] sm:$0xff] %v592
    %625 = vst [vmem:[#allocation2 + $0xa0] sm:$0xff] %v593
    %626 = vst [vmem:[#allocation2 + $0xa8] sm:$0xff] %v594
    %627 = vst [vmem:[#allocation2 + $0xb0] sm:$0xff] %v595
    %628 = vst [vmem:[#allocation2 + $0xb8] sm:$0xff] %v596
    %629 = vst [vmem:[#allocation2 + $0xc0] sm:$0xff] %v597
    %630 = vst [vmem:[#allocation2 + $0xc8] sm:$0xff] %v598
    %631 = vst [vmem:[#allocation2 + $0xd0] sm:$0xff] %v599
    %632 = vst [vmem:[#allocation2 + $0xd8] sm:$0xff] %v600
    %633 = vst [vmem:[#allocation2 + $0xe0] sm:$0xff] %v601
    %634 = vst [vmem:[#allocation2 + $0xe8] sm:$0xff] %v602
    %635 = vst [vmem:[#allocation2 + $0xf0] sm:$0xff] %v603
    %636 = vst [vmem:[#allocation2 + $0xf8] sm:$0xff] %v604
    // Predicated region
    $region22: #{tpu_custom_call.1} parent=1 // pred_check
      %p637 = pneg %p18
    $region23: #{tpu_custom_call.1} parent=1 // pred_check_branch
      %639 = sbr.rel (%p637) target = $region25
    $region24: #{tpu_custom_call.1} parent=1 // pred_region
      %v640 = vld [vmem:[%s2] sm:$0xff]
      %v641 = vld [vmem:[%s2 + $0x8] sm:$0xff]
      %v642 = vld [vmem:[%s2 + $0x10] sm:$0xff]
      %v643 = vld [vmem:[%s2 + $0x18] sm:$0xff]
      %v644 = vld [vmem:[%s2 + $0x20] sm:$0xff]
      %v645 = vld [vmem:[%s2 + $0x28] sm:$0xff]
      %v646 = vld [vmem:[%s2 + $0x30] sm:$0xff]
      %v647 = vld [vmem:[%s2 + $0x38] sm:$0xff]
      %v648 = vld [vmem:[%s2 + $0x40] sm:$0xff]
      %v649 = vld [vmem:[%s2 + $0x48] sm:$0xff]
      %v650 = vld [vmem:[%s2 + $0x50] sm:$0xff]
      %v651 = vld [vmem:[%s2 + $0x58] sm:$0xff]
      %v652 = vld [vmem:[%s2 + $0x60] sm:$0xff]
      %v653 = vld [vmem:[%s2 + $0x68] sm:$0xff]
      %v654 = vld [vmem:[%s2 + $0x70] sm:$0xff]
      %v655 = vld [vmem:[%s2 + $0x78] sm:$0xff]
      %v656 = vld [vmem:[%s2 + $0x80] sm:$0xff]
      %v657 = vld [vmem:[%s2 + $0x88] sm:$0xff]
      %v658 = vld [vmem:[%s2 + $0x90] sm:$0xff]
      %v659 = vld [vmem:[%s2 + $0x98] sm:$0xff]
      %v660 = vld [vmem:[%s2 + $0xa0] sm:$0xff]
      %v661 = vld [vmem:[%s2 + $0xa8] sm:$0xff]
      %v662 = vld [vmem:[%s2 + $0xb0] sm:$0xff]
      %v663 = vld [vmem:[%s2 + $0xb8] sm:$0xff]
      %v664 = vld [vmem:[%s2 + $0xc0] sm:$0xff]
      %v665 = vld [vmem:[%s2 + $0xc8] sm:$0xff]
      %v666 = vld [vmem:[%s2 + $0xd0] sm:$0xff]
      %v667 = vld [vmem:[%s2 + $0xd8] sm:$0xff]
      %v668 = vld [vmem:[%s2 + $0xe0] sm:$0xff]
      %v669 = vld [vmem:[%s2 + $0xe8] sm:$0xff]
      %v670 = vld [vmem:[%s2 + $0xf0] sm:$0xff]
      %v671 = vld [vmem:[%s2 + $0xf8] sm:$0xff]
      %v672 = vld [vmem:[#allocation2] sm:$0xff]
      %v673 = vld [vmem:[#allocation2 + $0x8] sm:$0xff]
      %v674 = vld [vmem:[#allocation2 + $0x10] sm:$0xff]
      %v675 = vld [vmem:[#allocation2 + $0x18] sm:$0xff]
      %v676 = vld [vmem:[#allocation2 + $0x20] sm:$0xff]
      %v677 = vld [vmem:[#allocation2 + $0x28] sm:$0xff]
      %v678 = vld [vmem:[#allocation2 + $0x30] sm:$0xff]
      %v679 = vld [vmem:[#allocation2 + $0x38] sm:$0xff]
      %v680 = vld [vmem:[#allocation2 + $0x40] sm:$0xff]
      %v681 = vld [vmem:[#allocation2 + $0x48] sm:$0xff]
      %v682 = vld [vmem:[#allocation2 + $0x50] sm:$0xff]
      %v683 = vld [vmem:[#allocation2 + $0x58] sm:$0xff]
      %v684 = vld [vmem:[#allocation2 + $0x60] sm:$0xff]
      %v685 = vld [vmem:[#allocation2 + $0x68] sm:$0xff]
      %v686 = vld [vmem:[#allocation2 + $0x70] sm:$0xff]
      %v687 = vld [vmem:[#allocation2 + $0x78] sm:$0xff]
      %v688 = vld [vmem:[#allocation2 + $0x80] sm:$0xff]
      %v689 = vld [vmem:[#allocation2 + $0x88] sm:$0xff]
      %v690 = vld [vmem:[#allocation2 + $0x90] sm:$0xff]
      %v691 = vld [vmem:[#allocation2 + $0x98] sm:$0xff]
      %v692 = vld [vmem:[#allocation2 + $0xa0] sm:$0xff]
      %v693 = vld [vmem:[#allocation2 + $0xa8] sm:$0xff]
      %v694 = vld [vmem:[#allocation2 + $0xb0] sm:$0xff]
      %v695 = vld [vmem:[#allocation2 + $0xb8] sm:$0xff]
      %v696 = vld [vmem:[#allocation2 + $0xc0] sm:$0xff]
      %v697 = vld [vmem:[#allocation2 + $0xc8] sm:$0xff]
      %v698 = vld [vmem:[#allocation2 + $0xd0] sm:$0xff]
      %v699 = vld [vmem:[#allocation2 + $0xd8] sm:$0xff]
      %v700 = vld [vmem:[#allocation2 + $0xe0] sm:$0xff]
      %v701 = vld [vmem:[#allocation2 + $0xe8] sm:$0xff]
      %v702 = vld [vmem:[#allocation2 + $0xf0] sm:$0xff]
      %v703 = vld [vmem:[#allocation2 + $0xf8] sm:$0xff]
      %705 = vset.pattern.permute.xlu0 0
      %706 = vperm.xlu0 %705, %v640
      %v707 = vpop.permute.xlu0 %706
      %710 = vset.pattern.permute.xlu0 0
      %711 = vperm.xlu0 %710, %v641
      %v712 = vpop.permute.xlu0 %711
      %715 = vset.pattern.permute.xlu0 0
      %716 = vperm.xlu0 %715, %v642
      %v717 = vpop.permute.xlu0 %716
      %720 = vset.pattern.permute.xlu0 0
      %721 = vperm.xlu0 %720, %v643
      %v722 = vpop.permute.xlu0 %721
      %725 = vset.pattern.permute.xlu0 0
      %726 = vperm.xlu0 %725, %v644
      %v727 = vpop.permute.xlu0 %726
      %730 = vset.pattern.permute.xlu0 0
      %731 = vperm.xlu0 %730, %v645
      %v732 = vpop.permute.xlu0 %731
      %735 = vset.pattern.permute.xlu0 0
      %736 = vperm.xlu0 %735, %v646
      %v737 = vpop.permute.xlu0 %736
      %740 = vset.pattern.permute.xlu0 0
      %741 = vperm.xlu0 %740, %v647
      %v742 = vpop.permute.xlu0 %741
      %745 = vset.pattern.permute.xlu0 0
      %746 = vperm.xlu0 %745, %v648
      %v747 = vpop.permute.xlu0 %746
      %750 = vset.pattern.permute.xlu0 0
      %751 = vperm.xlu0 %750, %v649
      %v752 = vpop.permute.xlu0 %751
      %755 = vset.pattern.permute.xlu0 0
      %756 = vperm.xlu0 %755, %v650
      %v757 = vpop.permute.xlu0 %756
      %760 = vset.pattern.permute.xlu0 0
      %761 = vperm.xlu0 %760, %v651
      %v762 = vpop.permute.xlu0 %761
      %765 = vset.pattern.permute.xlu0 0
      %766 = vperm.xlu0 %765, %v652
      %v767 = vpop.permute.xlu0 %766
      %770 = vset.pattern.permute.xlu0 0
      %771 = vperm.xlu0 %770, %v653
      %v772 = vpop.permute.xlu0 %771
      %775 = vset.pattern.permute.xlu0 0
      %776 = vperm.xlu0 %775, %v654
      %v777 = vpop.permute.xlu0 %776
      %780 = vset.pattern.permute.xlu0 0
      %781 = vperm.xlu0 %780, %v655
      %v782 = vpop.permute.xlu0 %781
      %785 = vset.pattern.permute.xlu0 0
      %786 = vperm.xlu0 %785, %v656
      %v787 = vpop.permute.xlu0 %786
      %790 = vset.pattern.permute.xlu0 0
      %791 = vperm.xlu0 %790, %v657
      %v792 = vpop.permute.xlu0 %791
      %795 = vset.pattern.permute.xlu0 0
      %796 = vperm.xlu0 %795, %v658
      %v797 = vpop.permute.xlu0 %796
      %800 = vset.pattern.permute.xlu0 0
      %801 = vperm.xlu0 %800, %v659
      %v802 = vpop.permute.xlu0 %801
      %805 = vset.pattern.permute.xlu0 0
      %806 = vperm.xlu0 %805, %v660
      %v807 = vpop.permute.xlu0 %806
      %810 = vset.pattern.permute.xlu0 0
      %811 = vperm.xlu0 %810, %v661
      %v812 = vpop.permute.xlu0 %811
      %815 = vset.pattern.permute.xlu0 0
      %816 = vperm.xlu0 %815, %v662
      %v817 = vpop.permute.xlu0 %816
      %820 = vset.pattern.permute.xlu0 0
      %821 = vperm.xlu0 %820, %v663
      %v822 = vpop.permute.xlu0 %821
      %825 = vset.pattern.permute.xlu0 0
      %826 = vperm.xlu0 %825, %v664
      %v827 = vpop.permute.xlu0 %826
      %830 = vset.pattern.permute.xlu0 0
      %831 = vperm.xlu0 %830, %v665
      %v832 = vpop.permute.xlu0 %831
      %835 = vset.pattern.permute.xlu0 0
      %836 = vperm.xlu0 %835, %v666
      %v837 = vpop.permute.xlu0 %836
      %840 = vset.pattern.permute.xlu0 0
      %841 = vperm.xlu0 %840, %v667
      %v842 = vpop.permute.xlu0 %841
      %845 = vset.pattern.permute.xlu0 0
      %846 = vperm.xlu0 %845, %v668
      %v847 = vpop.permute.xlu0 %846
      %850 = vset.pattern.permute.xlu0 0
      %851 = vperm.xlu0 %850, %v669
      %v852 = vpop.permute.xlu0 %851
      %855 = vset.pattern.permute.xlu0 0
      %856 = vperm.xlu0 %855, %v670
      %v857 = vpop.permute.xlu0 %856
      %860 = vset.pattern.permute.xlu0 0
      %861 = vperm.xlu0 %860, %v671
      %v862 = vpop.permute.xlu0 %861
      %v864 = vmul.f32 %v707, %v672
      %v865 = vmul.f32 %v712, %v673
      %v866 = vmul.f32 %v717, %v674
      %v867 = vmul.f32 %v722, %v675
      %v868 = vmul.f32 %v727, %v676
      %v869 = vmul.f32 %v732, %v677
      %v870 = vmul.f32 %v737, %v678
      %v871 = vmul.f32 %v742, %v679
      %v872 = vmul.f32 %v747, %v680
      %v873 = vmul.f32 %v752, %v681
      %v874 = vmul.f32 %v757, %v682
      %v875 = vmul.f32 %v762, %v683
      %v876 = vmul.f32 %v767, %v684
      %v877 = vmul.f32 %v772, %v685
      %v878 = vmul.f32 %v777, %v686
      %v879 = vmul.f32 %v782, %v687
      %v880 = vmul.f32 %v787, %v688
      %v881 = vmul.f32 %v792, %v689
      %v882 = vmul.f32 %v797, %v690
      %v883 = vmul.f32 %v802, %v691
      %v884 = vmul.f32 %v807, %v692
      %v885 = vmul.f32 %v812, %v693
      %v886 = vmul.f32 %v817, %v694
      %v887 = vmul.f32 %v822, %v695
      %v888 = vmul.f32 %v827, %v696
      %v889 = vmul.f32 %v832, %v697
      %v890 = vmul.f32 %v837, %v698
      %v891 = vmul.f32 %v842, %v699
      %v892 = vmul.f32 %v847, %v700
      %v893 = vmul.f32 %v852, %v701
      %v894 = vmul.f32 %v857, %v702
      %v895 = vmul.f32 %v862, %v703
      %v896 = vld [vmem:[%s3] sm:$0x1]
      %v898 = vperm.slane %v896, 0
      %v900 = vadd.f32 %v864, %v898
      %v901 = vadd.f32 %v865, %v898
      %v902 = vadd.f32 %v866, %v898
      %v903 = vadd.f32 %v867, %v898
      %v904 = vadd.f32 %v868, %v898
      %v905 = vadd.f32 %v869, %v898
      %v906 = vadd.f32 %v870, %v898
      %v907 = vadd.f32 %v871, %v898
      %v908 = vadd.f32 %v872, %v898
      %v909 = vadd.f32 %v873, %v898
      %v910 = vadd.f32 %v874, %v898
      %v911 = vadd.f32 %v875, %v898
      %v912 = vadd.f32 %v876, %v898
      %v913 = vadd.f32 %v877, %v898
      %v914 = vadd.f32 %v878, %v898
      %v915 = vadd.f32 %v879, %v898
      %v916 = vadd.f32 %v880, %v898
      %v917 = vadd.f32 %v881, %v898
      %v918 = vadd.f32 %v882, %v898
      %v919 = vadd.f32 %v883, %v898
      %v920 = vadd.f32 %v884, %v898
      %v921 = vadd.f32 %v885, %v898
      %v922 = vadd.f32 %v886, %v898
      %v923 = vadd.f32 %v887, %v898
      %v924 = vadd.f32 %v888, %v898
      %v925 = vadd.f32 %v889, %v898
      %v926 = vadd.f32 %v890, %v898
      %v927 = vadd.f32 %v891, %v898
      %v928 = vadd.f32 %v892, %v898
      %v929 = vadd.f32 %v893, %v898
      %v930 = vadd.f32 %v894, %v898
      %v931 = vadd.f32 %v895, %v898
      %932 = vst [vmem:[#allocation2] sm:$0xff] %v900
      %933 = vst [vmem:[#allocation2 + $0x8] sm:$0xff] %v901
      %934 = vst [vmem:[#allocation2 + $0x10] sm:$0xff] %v902
      %935 = vst [vmem:[#allocation2 + $0x18] sm:$0xff] %v903
      %936 = vst [vmem:[#allocation2 + $0x20] sm:$0xff] %v904
      %937 = vst [vmem:[#allocation2 + $0x28] sm:$0xff] %v905
      %938 = vst [vmem:[#allocation2 + $0x30] sm:$0xff] %v906
      %939 = vst [vmem:[#allocation2 + $0x38] sm:$0xff] %v907
      %940 = vst [vmem:[#allocation2 + $0x40] sm:$0xff] %v908
      %941 = vst [vmem:[#allocation2 + $0x48] sm:$0xff] %v909
      %942 = vst [vmem:[#allocation2 + $0x50] sm:$0xff] %v910
      %943 = vst [vmem:[#allocation2 + $0x58] sm:$0xff] %v911
      %944 = vst [vmem:[#allocation2 + $0x60] sm:$0xff] %v912
      %945 = vst [vmem:[#allocation2 + $0x68] sm:$0xff] %v913
      %946 = vst [vmem:[#allocation2 + $0x70] sm:$0xff] %v914
      %947 = vst [vmem:[#allocation2 + $0x78] sm:$0xff] %v915
      %948 = vst [vmem:[#allocation2 + $0x80] sm:$0xff] %v916
      %949 = vst [vmem:[#allocation2 + $0x88] sm:$0xff] %v917
      %950 = vst [vmem:[#allocation2 + $0x90] sm:$0xff] %v918
      %951 = vst [vmem:[#allocation2 + $0x98] sm:$0xff] %v919
      %952 = vst [vmem:[#allocation2 + $0xa0] sm:$0xff] %v920
      %953 = vst [vmem:[#allocation2 + $0xa8] sm:$0xff] %v921
      %954 = vst [vmem:[#allocation2 + $0xb0] sm:$0xff] %v922
      %955 = vst [vmem:[#allocation2 + $0xb8] sm:$0xff] %v923
      %956 = vst [vmem:[#allocation2 + $0xc0] sm:$0xff] %v924
      %957 = vst [vmem:[#allocation2 + $0xc8] sm:$0xff] %v925
      %958 = vst [vmem:[#allocation2 + $0xd0] sm:$0xff] %v926
      %959 = vst [vmem:[#allocation2 + $0xd8] sm:$0xff] %v927
      %960 = vst [vmem:[#allocation2 + $0xe0] sm:$0xff] %v928
      %961 = vst [vmem:[#allocation2 + $0xe8] sm:$0xff] %v929
      %962 = vst [vmem:[#allocation2 + $0xf0] sm:$0xff] %v930
      %963 = vst [vmem:[#allocation2 + $0xf8] sm:$0xff] %v931
    $region25: #{tpu_custom_call.1} parent=1 // pred_fallthru
      _
    // Predicated region
    $region26: #{tpu_custom_call.1} parent=1 // pred_check
      _
    $region27: #{tpu_custom_call.1} parent=1 // pred_check_branch
      %965 = sbr.rel (0) target = $region29
    $region28: #{tpu_custom_call.1} parent=1 // pred_region
      %967 = vsyncadd [#allocation3], 0
      %s968 = sshll.u32 [#allocation2], 4
      %s969 = int_to_ptr.vmem [resolvable:$true] %s968
      %s970 = sshll.u32 %s4, 4
      %s971 = int_to_ptr.hbm [resolvable:$true] %s970
      %976 = dma.vmem_to_hbm [thread:$0]  %s969, 4096, %s971, [#allocation3], 128, 128, 8
    $region29: #{tpu_custom_call.1} parent=1 // pred_fallthru
      _
    // Predicated region
    $region30: #{tpu_custom_call.1} parent=1 // pred_check
      _
    $region31: #{tpu_custom_call.1} parent=1 // pred_check_branch
      %978 = sbr.rel (0) target = $region33
    $region32: #{tpu_custom_call.1} parent=1 // pred_region
      %980 = dma.done [#allocation3], 4096
    $region33: #{tpu_custom_call.1} parent=1 // pred_fallthru
      _
    %981 = vsyncpa [#allocation3], 1

</llo_original>
